<compile_context>
chip_gen: v5e
topology: v5e:2x2
jax: 0.10.0
libtpu: 0.0.40
codegen_flags: <defaults>
</compile_context>

<pallas_src>
import math

import jax
import jax.numpy as jnp
from jax.experimental import pallas as pl
from jax.experimental.pallas import tpu as pltpu


def _round_up(x, m):
    return ((x + m - 1) // m) * m


def _rsh_norm_coefficients(max_l):
    # Identical construction to DataHub.calculate_rsh_normalization_coefficients.
    coef = [
        e
        for lh in range((max_l + 1) // 2)
        for e in [1.0] * (4 * lh + 1) + [-1.0] * (4 * lh + 3)
    ]
    if max_l % 2 == 0:
        coef.extend([1.0] * (2 * max_l + 1))
    return coef


def _make_datahub_kernel(max_l, signs):
    """Kernel: per-point L2 norm + real spherical harmonics up to max_l (<=2)."""
    # TODO(synk): extend closed-form RSH to l > 2 (the CUDA rsh op supports l <= 10).
    assert max_l <= 2

    def kernel(v_ref, out_ref):
        # v_ref: (3, TILE); keep everything as (1, TILE) 2-D slabs (lane-dense).
        x = v_ref[0:1, :]
        y = v_ref[1:2, :]
        z = v_ref[2:3, :]

        r2 = x * x + y * y + z * z
        r = jnp.sqrt(r2)

        # 1 / max(sqrt(r2), 1e-12) == rsqrt(max(r2, 1e-24)); rsqrt runs on the EUP
        # (free bundle slot here) instead of the multi-op VPU divide sequence.
        inv = jax.lax.rsqrt(jnp.maximum(r2, 1e-24))
        ux = x * inv
        uy = y * inv
        uz = z * inv

        rows = []
        # l = 0
        c0 = 0.28209479177387814  # sqrt(1/(4*pi))
        rows.append(jnp.full_like(x, signs[0] * c0))
        if max_l >= 1:
            # l = 1 : (m=-1, 0, +1) -> (y, z, x) axis convention
            c1 = 0.4886025119029199  # sqrt(3/(4*pi))
            rows.append((signs[1] * c1) * uy)
            rows.append((signs[2] * c1) * uz)
            rows.append((signs[3] * c1) * ux)
        if max_l >= 2:
            c2a = 1.0925484305920792   # 0.5*sqrt(15/pi)
            c2b = 0.31539156525252005  # 0.25*sqrt(5/pi)
            c2c = 0.5462742152960396   # 0.25*sqrt(15/pi)
            rows.append((signs[4] * c2a) * ux * uy)
            rows.append((signs[5] * c2a) * uy * uz)
            rows.append((signs[6] * c2b) * (3.0 * uz * uz - 1.0))
            rows.append((signs[7] * c2a) * ux * uz)
            rows.append((signs[8] * c2c) * (ux * ux - uy * uy))

        # radii ride along as the final row -> one packed, full-sublane store.
        rows.append(r)
        out_ref[...] = jnp.concatenate(rows, axis=0).astype(out_ref.dtype)

    return kernel


def datahub_rsh(radii_vectors, max_l, *, tile=8192, out_dtype=None):
    """Pallas-backed equivalent of the DataHub.forward hot path.

    Accepts radii_vectors as (N, 3) (PyTorch module convention) or (3, N)
    (preferred lane-dense layout).  Returns (Ys, radii) with
    Ys: ((max_l+1)^2, N), radii: (N,).
    """
    assert radii_vectors.ndim == 2
    if radii_vectors.shape[0] == 3 and radii_vectors.shape[1] != 3:
        v_t = radii_vectors  # already (3, N), no extra HBM pass
    else:
        # TODO(synk): producers should emit (3, N) directly; this XLA transpose is
        # an extra HBM pass (~24 B/pt on top of the kernel's ~52 B/pt).
        v_t = radii_vectors.T

    n = v_t.shape[1]
    assert n > 0
    dtype = v_t.dtype
    out_dtype = dtype if out_dtype is None else out_dtype
    lm = (max_l + 1) ** 2
    signs = _rsh_norm_coefficients(max_l)

    # Lane-tile selection (memory-bound kernel: big tiles amortize the ~0.35us
    # per-grid-step overhead; 2048-8192 is the sweet spot, sweep per chip).
    tile = _round_up(max(tile, 128), 128)
    n_128 = _round_up(n, 128)
    num_steps = -(-n_128 // tile)                       # ceil-div
    tile_eff = _round_up(-(-n_128 // num_steps), 128)   # balance steps, waste < 128/step
    n_pad = num_steps * tile_eff
    if n_pad != n:
        v_t = jnp.pad(v_t, ((0, 0), (0, n_pad - n)))

    kernel = _make_datahub_kernel(max_l, signs)
    out = pl.pallas_call(
        kernel,
        out_shape=jax.ShapeDtypeStruct((lm + 1, n_pad), out_dtype),
        grid_spec=pltpu.PrefetchScalarGridSpec(
            num_scalar_prefetch=0,
            grid=(num_steps,),
            in_specs=[pl.BlockSpec((3, tile_eff), lambda i: (0, i))],
            out_specs=pl.BlockSpec((lm + 1, tile_eff), lambda i: (0, i)),
        ),
        compiler_params=pltpu.CompilerParams(
            dimension_semantics=("parallel",),
        ),
    )(v_t)

    ys = out[:lm, :n]
    radii = out[lm, :n]
    return ys, radii


class DataHub:
    """JAX/Pallas port of e3_layer.persistent_point.data_hub.DataHub."""

    def __init__(self, representations, has_gates, normalization="norm"):
        assert len(representations) > 1
        assert normalization in ("norm", "component")
        self.representations = representations
        self.has_gates = has_gates
        self.normalization_type = normalization

        # find_max_l_out_in
        max_l_out = max_l_in = max_l = 0
        for Rs_in, Rs_out in zip(representations[:-1], representations[1:]):
            r_out = max(l for _, l in Rs_out)
            r_in = max(l for _, l in Rs_in)
            max_l_out = max(r_out, max_l_out)
            max_l_in = max(r_in, max_l_in)
            max_l = max(r_out + r_in, max_l)
        assert max_l <= 10
        self.max_l_out, self.max_l_in, self.max_l = max_l_out, max_l_in, max_l

        self.rsh_norm_coefficients = jnp.asarray(
            _rsh_norm_coefficients(self.max_l), dtype=jnp.float32
        )[:, None]

        # TODO(synk): Clebsch-Gordan coefficient tables and per-layer R/grad/feature
        # offsets are init-time metadata that forward() never reads; not reproduced here.
        self.Ys = None
        self.radii = None
        self.n_norm = None
        self.map_ab_p_to_a = None
        self.map_ab_p_to_b = None

    def forward(self, radii_vectors, n_norm, ab_p_to_a, ab_p_to_b):
        ys, radii = datahub_rsh(radii_vectors, self.max_l)
        self.Ys = ys            # already multiplied by rsh_norm_coefficients in-kernel
        self.radii = radii
        self.n_norm = n_norm
        self.map_ab_p_to_a = ab_p_to_a
        self.map_ab_p_to_b = ab_p_to_b
        return self.Ys, self.radii


def _reference_rsh(radii_vectors, max_l):
    """Pure-JAX reference matching the PyTorch forward (sqrt + clamped divide)."""
    r = jnp.sqrt(jnp.sum(radii_vectors * radii_vectors, axis=-1))
    u = radii_vectors / jnp.maximum(r, 1e-12)[:, None]
    x, y, z = u[:, 0], u[:, 1], u[:, 2]
    rows = [0.28209479177387814 * jnp.ones_like(x)]
    if max_l >= 1:
        c1 = 0.4886025119029199
        rows += [c1 * y, c1 * z, c1 * x]
    if max_l >= 2:
        c2a, c2b, c2c = 1.0925484305920792, 0.31539156525252005, 0.5462742152960396
        rows += [c2a * x * y, c2a * y * z, c2b * (3.0 * z * z - 1.0),
                 c2a * x * z, c2c * (x * x - y * y)]
    signs = jnp.asarray(_rsh_norm_coefficients(max_l), dtype=radii_vectors.dtype)[:, None]
    return jnp.stack(rows, axis=0) * signs, r


if __name__ == "__main__":
    key = jax.random.PRNGKey(0)
    k1, k2, k3 = jax.random.split(key, 3)

    # Two-layer representation list: (mul, l) pairs => max_l_out=1, max_l_in=1, max_l=2.
    representations = [[(4, 0), (4, 1)], [(4, 0), (4, 1)]]
    hub = DataHub(representations, has_gates=[False])

    n_pairs = 300  # deliberately not a multiple of 128 to exercise padding
    radii_vectors = jax.random.normal(k1, (n_pairs, 3), dtype=jnp.float32)
    n_norm = 8.0
    ab_p_to_a = jax.random.randint(k2, (n_pairs,), 0, 32, dtype=jnp.int32)
    ab_p_to_b = jax.random.randint(k3, (n_pairs,), 0, 32, dtype=jnp.int32)

    ys, radii = hub.forward(radii_vectors, n_norm, ab_p_to_a, ab_p_to_b)
    jax.block_until_ready((ys, radii))

    # Shape checks (PyTorch module conventions).
    assert ys.shape == ((hub.max_l + 1) ** 2, n_pairs)
    assert radii.shape == (n_pairs,)

    # Numerical check against a pure-JAX reference of the same math.
    ys_ref, radii_ref = _reference_rsh(radii_vectors, hub.max_l)
    assert jnp.allclose(ys, ys_ref, rtol=1e-4, atol=1e-5)
    assert jnp.allclose(radii, radii_ref, rtol=1e-4, atol=1e-5)

    print("KERNEL_OK")
</pallas_src>

<mosaic_0001>
module attributes {stable_mosaic.version = 11 : i64} {
  func.func @kernel(%arg0: i32, %arg1: memref<3x384xf32, #tpu.memory_space<vmem>>, %arg2: memref<10x384xf32, #tpu.memory_space<vmem>>) attributes {dimension_semantics = [#tpu.dimension_semantics<parallel>], iteration_bounds = array<i64: 1>, scalar_prefetch = 0 : i64, scratch_operands = 0 : i64, tpu.core_type = #tpu.core_type<tc>, window_params = [{transform_indices = @transform_0, window_bounds = array<i64: 3, 384>}, {transform_indices = @transform_1, window_bounds = array<i64: 10, 384>}]} {
    %c0 = arith.constant 0 : index
    %c0_0 = arith.constant 0 : index
    %0 = vector.load %arg1[%c0, %c0_0] : memref<3x384xf32, #tpu.memory_space<vmem>>, vector<1x384xf32>
    %c1 = arith.constant 1 : index
    %c0_1 = arith.constant 0 : index
    %1 = vector.load %arg1[%c1, %c0_1] : memref<3x384xf32, #tpu.memory_space<vmem>>, vector<1x384xf32>
    %c2 = arith.constant 2 : index
    %c0_2 = arith.constant 0 : index
    %2 = vector.load %arg1[%c2, %c0_2] : memref<3x384xf32, #tpu.memory_space<vmem>>, vector<1x384xf32>
    %3 = arith.mulf %0, %0 : vector<1x384xf32>
    %4 = arith.mulf %1, %1 : vector<1x384xf32>
    %5 = arith.addf %3, %4 : vector<1x384xf32>
    %6 = arith.mulf %2, %2 : vector<1x384xf32>
    %7 = arith.addf %5, %6 : vector<1x384xf32>
    %8 = math.sqrt %7 : vector<1x384xf32>
    %cst = arith.constant 1.000000e-24 : f32
    %9 = vector.broadcast %cst : f32 to vector<1x384xf32>
    %10 = arith.maximumf %7, %9 : vector<1x384xf32>
    %11 = math.rsqrt %10 : vector<1x384xf32>
    %12 = arith.mulf %0, %11 : vector<1x384xf32>
    %13 = arith.mulf %1, %11 : vector<1x384xf32>
    %14 = arith.mulf %2, %11 : vector<1x384xf32>
    %cst_3 = arith.constant 0.282094806 : f32
    %15 = vector.broadcast %cst_3 : f32 to vector<1x384xf32>
    %cst_4 = arith.constant -0.488602519 : f32
    %16 = vector.broadcast %cst_4 : f32 to vector<1x384xf32>
    %17 = arith.mulf %16, %13 : vector<1x384xf32>
    %cst_5 = arith.constant -0.488602519 : f32
    %18 = vector.broadcast %cst_5 : f32 to vector<1x384xf32>
    %19 = arith.mulf %18, %14 : vector<1x384xf32>
    %cst_6 = arith.constant -0.488602519 : f32
    %20 = vector.broadcast %cst_6 : f32 to vector<1x384xf32>
    %21 = arith.mulf %20, %12 : vector<1x384xf32>
    %cst_7 = arith.constant 1.09254849 : f32
    %22 = vector.broadcast %cst_7 : f32 to vector<1x384xf32>
    %23 = arith.mulf %22, %12 : vector<1x384xf32>
    %24 = arith.mulf %23, %13 : vector<1x384xf32>
    %cst_8 = arith.constant 1.09254849 : f32
    %25 = vector.broadcast %cst_8 : f32 to vector<1x384xf32>
    %26 = arith.mulf %25, %13 : vector<1x384xf32>
    %27 = arith.mulf %26, %14 : vector<1x384xf32>
    %cst_9 = arith.constant 3.000000e+00 : f32
    %28 = vector.broadcast %cst_9 : f32 to vector<1x384xf32>
    %29 = arith.mulf %28, %14 : vector<1x384xf32>
    %30 = arith.mulf %29, %14 : vector<1x384xf32>
    %cst_10 = arith.constant 1.000000e+00 : f32
    %31 = vector.broadcast %cst_10 : f32 to vector<1x384xf32>
    %32 = arith.subf %30, %31 : vector<1x384xf32>
    %cst_11 = arith.constant 0.31539157 : f32
    %33 = vector.broadcast %cst_11 : f32 to vector<1x384xf32>
    %34 = arith.mulf %33, %32 : vector<1x384xf32>
    %cst_12 = arith.constant 1.09254849 : f32
    %35 = vector.broadcast %cst_12 : f32 to vector<1x384xf32>
    %36 = arith.mulf %35, %12 : vector<1x384xf32>
    %37 = arith.mulf %36, %14 : vector<1x384xf32>
    %38 = arith.mulf %12, %12 : vector<1x384xf32>
    %39 = arith.mulf %13, %13 : vector<1x384xf32>
    %40 = arith.subf %38, %39 : vector<1x384xf32>
    %cst_13 = arith.constant 0.546274245 : f32
    %41 = vector.broadcast %cst_13 : f32 to vector<1x384xf32>
    %42 = arith.mulf %41, %40 : vector<1x384xf32>
    %43 = tpu.concatenate %15, %17, %19, %21, %24, %27, %34, %37, %42, %8 in 0 : vector<1x384xf32>, vector<1x384xf32>, vector<1x384xf32>, vector<1x384xf32>, vector<1x384xf32>, vector<1x384xf32>, vector<1x384xf32>, vector<1x384xf32>, vector<1x384xf32>, vector<1x384xf32> -> vector<10x384xf32>
    %c0_14 = arith.constant 0 : index
    %c0_15 = arith.constant 0 : index
    %44 = vector.load %arg2[%c0_14, %c0_15] : memref<10x384xf32, #tpu.memory_space<vmem>>, vector<10x384xf32>
    tpu.vector_store %arg2[%c0_14, %c0_15], %43 {strides = array<i32>} : memref<10x384xf32, #tpu.memory_space<vmem>>, vector<10x384xf32>,
    return
  }
  func.func @transform_0(%arg0: i32) -> (i32, i32) {
    %c0_i32 = arith.constant 0 : i32
    %c0_i32_0 = arith.constant 0 : i32
    return %c0_i32, %arg0 : i32, i32
  }
  func.func @transform_1(%arg0: i32) -> (i32, i32) {
    %c0_i32 = arith.constant 0 : i32
    %c0_i32_0 = arith.constant 0 : i32
    return %c0_i32, %arg0 : i32, i32
  }
}

</mosaic_0001>

<llo_original>
// kernel: tpu_custom_call.1
$region0: #{tpu_custom_call.1}
  #allocation0 [shape = 'u32[]', space=smem, size = 0x4, offset = 0x4, fixed_abs, tag = 'smem constant byte address 0x4 - core index']
  #allocation1 [shape = 'u32[72,128]{1,0:T(1,128)}', space=vmem, size = 0x9000, scoped, tag = 'internal scratch']
  %s0 = inlined_call_operand.hbm [shape: f32[3,384], index: 0, kind: input, shape index: {}]
  %s1 = inlined_call_operand.hbm [shape: f32[10,384], index: 1, kind: output, shape index: {}]
  %s2 = sld [smem:[#allocation0]]
  $region18: #{tpu_custom_call.1} parent=0
    _
  %s4 = ssub.s32 1, %s2
  %s5 = scalar_select 0, %s4, %s2
  $region1: #{tpu_custom_call.1} parent=0
    #allocation2 [shape = 'u8[6144]{0}', space=vmem, size = 0x1800, scoped, tag = 'input window, operand 0, single buffered']
    #allocation3 [shape = 's32[1]{0}', space=sflag, size = 0x4, scoped, tag = 'scoped memory for tpu_custom_call.1']
    #allocation4 [shape = 's32[1]{0}', space=sflag, size = 0x4, scoped, tag = 'scoped memory for tpu_custom_call.1']
    #allocation5 [shape = 'u8[24576]{0}', space=vmem, size = 0x6000, scoped, tag = 'output window, operand 0, single buffered']
    %6 = vsyncpa [#allocation3], 0
    %7 = vsyncpa [#allocation4], 0
    // Predicated region
    $region2: #{tpu_custom_call.1} parent=1 // pred_check
      _
    $region3: #{tpu_custom_call.1} parent=1 // pred_check_branch
      %9 = sbr.rel (0) target = $region5
    $region4: #{tpu_custom_call.1} parent=1 // pred_region
      %11 = vsyncadd [#allocation3], 0
      %s13 = sshll.u32 %s0, 4
      %s14 = int_to_ptr.hbm [resolvable:$true] %s13
      %s15 = sshll.u32 [#allocation2], 4
      %s16 = int_to_ptr.vmem [resolvable:$true] %s15
      %18 = dma.hbm_to_vmem [thread:$0]  %s14, 192, %s16, [#allocation3]
    $region5: #{tpu_custom_call.1} parent=1 // pred_fallthru
      _
    // Predicated region
    $region6: #{tpu_custom_call.1} parent=1 // pred_check
      _
    $region7: #{tpu_custom_call.1} parent=1 // pred_check_branch
      %20 = sbr.rel (0) target = $region9
    $region8: #{tpu_custom_call.1} parent=1 // pred_region
      %22 = dma.done [#allocation3], 192
    $region9: #{tpu_custom_call.1} parent=1 // pred_fallthru
      _
    %v23 = vld [vmem:[#allocation2] ss:$4 sm:$0x7]
    %s24 = scalar_lea.vmem [#allocation2], 1
    %v25 = vld [vmem:[%s24] ss:$4 sm:$0x7]
    %s26 = scalar_lea.vmem [#allocation2], 2
    %v27 = vld [vmem:[%s26] ss:$4 sm:$0x7]
    %v28 = vmul.f32 %v23, %v23
    %v29 = vmul.f32 %v25, %v25
    %v30 = vadd.f32 %v28, %v29
    %v31 = vmul.f32 %v27, %v27
    %v32 = vadd.f32 %v30, %v31
    %v33 = vrsqrt.pop %v32
    %v34 = vmul.f32 %v33, %v32
    %v35 = vmul.f32 %v34, %v33
    %v36 = vmul.f32 0.5, %v35
    %v37 = vsub.f32 1.5, %v36
    %v38 = vmul.f32 %v33, %v37
    %v39 = vmul.f32 %v32, %v38
    %vm40 = vcmp.eq.f32.partialorder %v32, inf
    %v41 = vsel %vm40, %v32, %v39
    %vm42 = vcmp.eq.f32.partialorder %v32, 0.0
    %v43 = vand.u32 %v32, 2147483648
    %v44 = vsel %vm42, %v43, %v41
    %v45 = vmax.f32 %v32, 1e-24
    %v46 = vrsqrt.pop %v45
    %v47 = vmul.f32 %v46, %v45
    %v48 = vmul.f32 %v47, %v46
    %v49 = vmul.f32 0.5, %v48
    %v50 = vsub.f32 1.5, %v49
    %v51 = vmul.f32 %v46, %v50
    %vm52 = vweird.f32 %v45
    %vm53 = vweird.f32 %v46
    %vm54 = vmor %vm52, %vm53
    %v55 = vsel %vm54, %v46, %v51
    %v56 = vmul.f32 %v23, %v55
    %v57 = vmul.f32 %v25, %v55
    %v58 = vmul.f32 %v27, %v55
    %v59 = vmul.f32 %v57, -0.48860252
    %v60 = vmul.f32 %v58, -0.48860252
    %v61 = vmul.f32 %v56, -0.48860252
    %v62 = vmul.f32 %v56, 1.0925485
    %v63 = vmul.f32 %v62, %v57
    %v64 = vmul.f32 %v57, 1.0925485
    %v65 = vmul.f32 %v64, %v58
    %v66 = vmul.f32 %v58, 3.0
    %v67 = vmul.f32 %v66, %v58
    %v68 = vsub.f32 %v67, 1.0
    %v69 = vmul.f32 %v68, 0.31539157
    %v70 = vmul.f32 %v62, %v58
    %v71 = vmul.f32 %v56, %v56
    %v72 = vmul.f32 %v57, %v57
    %v73 = vsub.f32 %v71, %v72
    %v74 = vmul.f32 %v73, 0.54627424
    %v76 = vperm.slane %v59, 0
    %v77 = vperm.slane %v59, 1
    %v78 = vperm.slane %v59, 2
    %v83 = vperm.slane %v60, 0
    %v84 = vperm.slane %v60, 1
    %v85 = vperm.slane %v60, 2
    %v90 = vperm.slane %v61, 0
    %v91 = vperm.slane %v61, 1
    %v92 = vperm.slane %v61, 2
    %v97 = vperm.slane %v63, 0
    %v98 = vperm.slane %v63, 1
    %v99 = vperm.slane %v63, 2
    %v104 = vperm.slane %v65, 0
    %v105 = vperm.slane %v65, 1
    %v106 = vperm.slane %v65, 2
    %v111 = vperm.slane %v69, 0
    %v112 = vperm.slane %v69, 1
    %v113 = vperm.slane %v69, 2
    %v118 = vperm.slane %v70, 0
    %v119 = vperm.slane %v70, 1
    %v120 = vperm.slane %v70, 2
    %v125 = vperm.slane %v74, 0
    %v126 = vperm.slane %v74, 1
    %v127 = vperm.slane %v74, 2
    %v132 = vperm.slane %v44, 0
    %v133 = vperm.slane %v44, 1
    %v134 = vperm.slane %v44, 2
    %vm138 = vcmask 1040384
    %v139 = vsel %vm138, 0.2820948, %v76
    %v140 = vsel %vm138, 0.2820948, %v77
    %v141 = vsel %vm138, 0.2820948, %v78
    %vm142 = vcmask 1041408
    %v143 = vsel %vm142, %v139, %v83
    %v144 = vsel %vm142, %v140, %v84
    %v145 = vsel %vm142, %v141, %v85
    %vm146 = vcmask 1042432
    %v147 = vsel %vm146, %v143, %v90
    %v148 = vsel %vm146, %v144, %v91
    %v149 = vsel %vm146, %v145, %v92
    %vm150 = vcmask 1043456
    %v151 = vsel %vm150, %v147, %v97
    %v152 = vsel %vm150, %v148, %v98
    %v153 = vsel %vm150, %v149, %v99
    %vm154 = vcmask 1044480
    %v155 = vsel %vm154, %v151, %v104
    %v156 = vsel %vm154, %v152, %v105
    %v157 = vsel %vm154, %v153, %v106
    %vm158 = vcmask 1045504
    %v159 = vsel %vm158, %v155, %v111
    %v160 = vsel %vm158, %v156, %v112
    %v161 = vsel %vm158, %v157, %v113
    %vm162 = vcmask 1046528
    %v163 = vsel %vm162, %v159, %v118
    %v164 = vsel %vm162, %v160, %v119
    %v165 = vsel %vm162, %v161, %v120
    %v166 = vsel %vm138, %v125, %v132
    %v167 = vsel %vm138, %v126, %v133
    %v168 = vsel %vm138, %v127, %v134
    %169 = vst [vmem:[#allocation5] sm:$0xff] %v163
    %170 = vst [vmem:[#allocation5 + $0x8] sm:$0xff] %v164
    %171 = vst [vmem:[#allocation5 + $0x10] sm:$0xff] %v165
    %172 = vst [vmem:[#allocation5 + $0x18] sm:$0x3] %v166
    %173 = vst [vmem:[#allocation5 + $0x20] sm:$0x3] %v167
    %174 = vst [vmem:[#allocation5 + $0x28] sm:$0x3] %v168
    // Predicated region
    $region10: #{tpu_custom_call.1} parent=1 // pred_check
      _
    $region11: #{tpu_custom_call.1} parent=1 // pred_check_branch
      %176 = sbr.rel (0) target = $region13
    $region12: #{tpu_custom_call.1} parent=1 // pred_region
      %178 = vsyncadd [#allocation4], 0
      %s179 = sshll.u32 [#allocation5], 4
      %s180 = int_to_ptr.vmem [resolvable:$true] %s179
      %s181 = sshll.u32 %s1, 4
      %s182 = int_to_ptr.hbm [resolvable:$true] %s181
      %187 = dma.vmem_to_hbm [thread:$0]  %s180, 768, %s182, [#allocation4], 384, 384, 24
    $region13: #{tpu_custom_call.1} parent=1 // pred_fallthru
      _
    // Predicated region
    $region14: #{tpu_custom_call.1} parent=1 // pred_check
      _
    $region15: #{tpu_custom_call.1} parent=1 // pred_check_branch
      %189 = sbr.rel (0) target = $region17
    $region16: #{tpu_custom_call.1} parent=1 // pred_region
      %191 = dma.done [#allocation4], 768
    $region17: #{tpu_custom_call.1} parent=1 // pred_fallthru
      _
    %192 = vsyncpa [#allocation3], 1
    %193 = vsyncpa [#allocation4], 1

</llo_original>
